<compile_context>
chip_gen: v6e
topology: v6e:2x2x1
jax: 0.10.0
libtpu: 0.0.40
codegen_flags: <defaults>
</compile_context>

<pallas_src>
import jax
import jax.numpy as jnp
from jax.experimental import pallas as pl
from jax.experimental.pallas import tpu as pltpu


def _attn_classify_kernel(sim_ref, y_ref, out_ref):
    # sim_ref: (TB, S), y_ref: (TB, S, C), out_ref: (TB, C)
    s = sim_ref[...].astype(jnp.float32)                    # (TB, S)
    m = jnp.max(s, axis=-1, keepdims=True)                  # (TB, 1)
    e = jnp.exp(s - m)                                      # (TB, S)
    denom = jnp.sum(e, axis=-1, keepdims=True)              # (TB, 1)
    # Exact divide: denom is a tiny (TB,1) vector, and the approximate EUP
    # reciprocal's ~1e-3 relative error fails the accuracy check.
    p = e / denom                                            # softmax over S
    y = y_ref[...].astype(jnp.float32)                      # (TB, S, C)
    # Degenerate per-row matmul -> VPU broadcast-multiply + sublane reduce.
    out = jnp.sum(p[:, :, None] * y, axis=1)                # (TB, C), f32 acc
    out_ref[...] = out.astype(out_ref.dtype)


def _round_up(x, m):
    return ((x + m - 1) // m) * m


def _pick_block_b(B, S, C, sim_dtype, y_dtype, out_dtype, budget_bytes):
    """Largest power-of-two TB (>=8) whose double-buffered VMEM tiles fit."""
    lane_S = _round_up(S, 128)
    lane_C = _round_up(C, 128)
    sub_S = _round_up(S, 8)
    sim_item = jnp.dtype(sim_dtype).itemsize
    y_item = jnp.dtype(y_dtype).itemsize
    out_item = jnp.dtype(out_dtype).itemsize

    def vmem_bytes(tb):
        sub_tb = _round_up(tb, 8)
        sim_b = sub_tb * lane_S * sim_item          # (TB, S) tile, lane-padded
        y_b = tb * sub_S * lane_C * y_item          # (TB, S, C) tile
        out_b = sub_tb * lane_C * out_item          # (TB, C) tile
        return 2 * (sim_b + y_b + out_b)            # pipeline double-buffering

    tb = 8
    max_tb = max(8, min(1024, _round_up(B, 8)))
    while tb * 2 <= max_tb and vmem_bytes(tb * 2) <= budget_bytes:
        tb *= 2
    return tb


def attentional_classify(similarities, support_set_y, *, block_b=None,
                         vmem_limit_bytes=48 * 1024 * 1024):
    """similarities: [B, S]; support_set_y: [B, S, C] -> [B, C]."""
    B, S = similarities.shape
    Bb, Ss, C = support_set_y.shape
    assert B == Bb and S == Ss

    out_dtype = jnp.result_type(similarities.dtype, support_set_y.dtype)

    if block_b is None:
        # Keep the live tiles well under the scoped-VMEM request (v7x has
        # only 64 MiB physical; v5e's default scoped limit is 16 MiB).
        block_b = _pick_block_b(B, S, C, similarities.dtype,
                                support_set_y.dtype, out_dtype,
                                budget_bytes=(vmem_limit_bytes * 2) // 3)

    # Pad the batch so every grid step processes a full (block_b, ...) tile.
    Bp = _round_up(B, block_b)
    if Bp != B:
        similarities = jnp.pad(similarities, ((0, Bp - B), (0, 0)))
        support_set_y = jnp.pad(support_set_y,
                                ((0, Bp - B), (0, 0), (0, 0)))

    out = pl.pallas_call(
        _attn_classify_kernel,
        out_shape=jax.ShapeDtypeStruct((Bp, C), out_dtype),
        grid_spec=pltpu.PrefetchScalarGridSpec(
            num_scalar_prefetch=0,
            grid=(Bp // block_b,),
            in_specs=[
                pl.BlockSpec((block_b, S), lambda b: (b, 0)),
                pl.BlockSpec((block_b, S, C), lambda b: (b, 0, 0)),
            ],
            out_specs=pl.BlockSpec((block_b, C), lambda b: (b, 0)),
        ),
        compiler_params=pltpu.CompilerParams(
            dimension_semantics=("parallel",),
            vmem_limit_bytes=vmem_limit_bytes,
        ),
    )(similarities, support_set_y)
    # TODO(synk): PyTorch's .squeeze() would also drop B if B == 1; we keep [B, C].
    return out[:B]


def _reference(similarities, support_set_y):
    p = jax.nn.softmax(similarities.astype(jnp.float32), axis=1)
    return jnp.einsum("bs,bsc->bc", p, support_set_y.astype(jnp.float32))


if __name__ == "__main__":
    key = jax.random.PRNGKey(0)
    k1, k2, k3, k4 = jax.random.split(key, 4)

    # Small shapes consistent with the module: batch=2, support-set seq=8,
    # classes=16.
    B, S, C = 2, 8, 16
    similarities = jax.random.normal(k1, (B, S), dtype=jnp.float32)
    labels = jax.random.randint(k2, (B, S), 0, C)
    support_set_y = jax.nn.one_hot(labels, C, dtype=jnp.float32)

    out = attentional_classify(similarities, support_set_y)
    out = jax.block_until_ready(out)
    ref = _reference(similarities, support_set_y)
    assert out.shape == (B, C)
    assert jnp.allclose(out, ref, atol=1e-4, rtol=1e-4), (out, ref)

    # Second check: batch not a multiple of the block size, multi-step grid.
    B2 = 20
    sim2 = jax.random.normal(k3, (B2, S), dtype=jnp.float32)
    lbl2 = jax.random.randint(k4, (B2, S), 0, C)
    y2 = jax.nn.one_hot(lbl2, C, dtype=jnp.float32)
    out2 = jax.block_until_ready(
        attentional_classify(sim2, y2, block_b=8))
    ref2 = _reference(sim2, y2)
    assert out2.shape == (B2, C)
    assert jnp.allclose(out2, ref2, atol=1e-4, rtol=1e-4), (out2, ref2)

    print("KERNEL_OK")
</pallas_src>

<mosaic_0001>
module attributes {stable_mosaic.version = 11 : i64} {
  func.func @_attn_classify_kernel(%arg0: i32, %arg1: memref<8x8xf32, #tpu.memory_space<vmem>>, %arg2: memref<8x8x16xf32, #tpu.memory_space<vmem>>, %arg3: memref<8x16xf32, #tpu.memory_space<vmem>>) attributes {dimension_semantics = [#tpu.dimension_semantics<parallel>], iteration_bounds = array<i64: 1>, scalar_prefetch = 0 : i64, scratch_operands = 0 : i64, tpu.core_type = #tpu.core_type<tc>, window_params = [{transform_indices = @transform_0, window_bounds = array<i64: 8, 8>}, {transform_indices = @transform_1, window_bounds = array<i64: 8, 8, 16>}, {transform_indices = @transform_2, window_bounds = array<i64: 8, 16>}]} {
    %c0 = arith.constant 0 : index
    %c0_0 = arith.constant 0 : index
    %0 = vector.load %arg1[%c0, %c0_0] : memref<8x8xf32, #tpu.memory_space<vmem>>, vector<8x8xf32>
    %cst = arith.constant dense<0xFF800000> : vector<8xf32>
    %1 = vector.multi_reduction <maximumf>, %0, %cst [1] : vector<8x8xf32> to vector<8xf32>
    %2 = vector.shape_cast %1 : vector<8xf32> to vector<8x1xf32>
    %3 = vector.broadcast %2 : vector<8x1xf32> to vector<8x8xf32>
    %4 = arith.subf %0, %3 : vector<8x8xf32>
    %5 = math.exp %4 : vector<8x8xf32>
    %cst_1 = arith.constant dense<0.000000e+00> : vector<8xf32>
    %6 = vector.multi_reduction <add>, %5, %cst_1 [1] : vector<8x8xf32> to vector<8xf32>
    %7 = vector.shape_cast %6 : vector<8xf32> to vector<8x1xf32>
    %8 = vector.broadcast %7 : vector<8x1xf32> to vector<8x8xf32>
    %9 = arith.divf %5, %8 : vector<8x8xf32>
    %c0_2 = arith.constant 0 : index
    %c0_3 = arith.constant 0 : index
    %c0_4 = arith.constant 0 : index
    %10 = vector.load %arg2[%c0_2, %c0_3, %c0_4] : memref<8x8x16xf32, #tpu.memory_space<vmem>>, vector<8x8x16xf32>
    %11 = vector.shape_cast %9 : vector<8x8xf32> to vector<8x8x1xf32>
    %12 = vector.broadcast %11 : vector<8x8x1xf32> to vector<8x8x16xf32>
    %13 = arith.mulf %12, %10 : vector<8x8x16xf32>
    %cst_5 = arith.constant dense<0.000000e+00> : vector<8x16xf32>
    %14 = vector.multi_reduction <add>, %13, %cst_5 [1] : vector<8x8x16xf32> to vector<8x16xf32>
    %c0_6 = arith.constant 0 : index
    %c0_7 = arith.constant 0 : index
    %15 = vector.load %arg3[%c0_6, %c0_7] : memref<8x16xf32, #tpu.memory_space<vmem>>, vector<8x16xf32>
    tpu.vector_store %arg3[%c0_6, %c0_7], %14 {strides = array<i32>} : memref<8x16xf32, #tpu.memory_space<vmem>>, vector<8x16xf32>,
    return
  }
  func.func @transform_0(%arg0: i32) -> (i32, i32) {
    %c0_i32 = arith.constant 0 : i32
    %c0_i32_0 = arith.constant 0 : i32
    return %arg0, %c0_i32 : i32, i32
  }
  func.func @transform_1(%arg0: i32) -> (i32, i32, i32) {
    %c0_i32 = arith.constant 0 : i32
    %c0_i32_0 = arith.constant 0 : i32
    %c0_i32_1 = arith.constant 0 : i32
    return %arg0, %c0_i32, %c0_i32_0 : i32, i32, i32
  }
  func.func @transform_2(%arg0: i32) -> (i32, i32) {
    %c0_i32 = arith.constant 0 : i32
    %c0_i32_0 = arith.constant 0 : i32
    return %arg0, %c0_i32 : i32, i32
  }
}

</mosaic_0001>

<llo_original>
// kernel: tpu_custom_call.1
$region0: #{tpu_custom_call.1}
  #allocation0 [shape = 'u32[]', space=smem, size = 0x4, offset = 0x4, fixed_abs, tag = 'smem constant byte address 0x4 - core index']
  #allocation1 [shape = 'u32[144,128]{1,0:T(1,128)}', space=vmem, size = 0x12000, scoped, tag = 'internal scratch']
  %s0 = inlined_call_operand.hbm [shape: f32[8,8], index: 0, kind: input, shape index: {}]
  %s1 = inlined_call_operand.hbm [shape: f32[8,8,16], index: 1, kind: input, shape index: {}]
  %s2 = inlined_call_operand.hbm [shape: f32[8,16], index: 2, kind: output, shape index: {}]
  %s3 = sld [smem:[#allocation0]]
  $region26: #{tpu_custom_call.1} parent=0
    _
  %s5 = ssub.s32 1, %s3
  %s6 = scalar_select 0, %s5, %s3
  $region1: #{tpu_custom_call.1} parent=0
    #allocation2 [shape = 'u8[4096]{0}', space=vmem, size = 0x1000, scoped, tag = 'input window, operand 0, single buffered']
    #allocation3 [shape = 's32[1]{0}', space=sflag, size = 0x4, scoped, tag = 'scoped memory for tpu_custom_call.1']
    #allocation4 [shape = 's32[1]{0}', space=sflag, size = 0x4, scoped, tag = 'scoped memory for tpu_custom_call.1']
    #allocation5 [shape = 'u8[32768]{0}', space=vmem, size = 0x8000, scoped, tag = 'input window, operand 1, single buffered']
    #allocation6 [shape = 's32[1]{0}', space=sflag, size = 0x4, scoped, tag = 'scoped memory for tpu_custom_call.1']
    #allocation7 [shape = 'u8[4096]{0}', space=vmem, size = 0x1000, scoped, tag = 'output window, operand 0, single buffered']
    %7 = vsyncpa [#allocation3], 0
    %8 = vsyncpa [#allocation6], 0
    %9 = vsyncpa [#allocation4], 0
    // Predicated region
    $region2: #{tpu_custom_call.1} parent=1 // pred_check
      _
    $region3: #{tpu_custom_call.1} parent=1 // pred_check_branch
      %11 = sbr.rel (0) target = $region5
    $region4: #{tpu_custom_call.1} parent=1 // pred_region
      %s13 = ssub.s32 128, 128
      %14 = vsyncadd [#allocation3], %s13
      %s16 = sshll.u32 [#allocation2], 4
      %s17 = int_to_ptr.vmem [resolvable:$true] %s16
      %19 = dma.hbm_to_vmem [thread:$0]  %s0, 128, %s17, [#allocation3]
    $region5: #{tpu_custom_call.1} parent=1 // pred_fallthru
      _
    // Predicated region
    $region6: #{tpu_custom_call.1} parent=1 // pred_check
      _
    $region7: #{tpu_custom_call.1} parent=1 // pred_check_branch
      %21 = sbr.rel (0) target = $region9
    $region8: #{tpu_custom_call.1} parent=1 // pred_region
      %s23 = ssub.s32 1024, 1024
      %24 = vsyncadd [#allocation6], %s23
      %s25 = sshll.u32 [#allocation5], 4
      %s26 = int_to_ptr.vmem [resolvable:$true] %s25
      %31 = dma.hbm_to_vmem [thread:$0]  %s1, 1024, %s26, [#allocation6], 128, 128, 8
    $region9: #{tpu_custom_call.1} parent=1 // pred_fallthru
      _
    // Predicated region
    $region10: #{tpu_custom_call.1} parent=1 // pred_check
      _
    $region11: #{tpu_custom_call.1} parent=1 // pred_check_branch
      %33 = sbr.rel (0) target = $region13
    $region12: #{tpu_custom_call.1} parent=1 // pred_region
      %34 = dma.done [#allocation3], 128
    $region13: #{tpu_custom_call.1} parent=1 // pred_fallthru
      _
    // Predicated region
    $region14: #{tpu_custom_call.1} parent=1 // pred_check
      _
    $region15: #{tpu_custom_call.1} parent=1 // pred_check_branch
      %36 = sbr.rel (0) target = $region17
    $region16: #{tpu_custom_call.1} parent=1 // pred_region
      %37 = dma.done [#allocation6], 1024
    $region17: #{tpu_custom_call.1} parent=1 // pred_fallthru
      _
    %v38 = vld [vmem:[#allocation2] sm:$0xff]
    %vm39 = vcmask 64512
    %v40 = vsel %vm39, %v38, -inf
    %41 = vmax.xlane.f32.xlu0 %v40
    %v42 = vpop.xlane.xlu0 %41
    %v43 = vsub.f32 %v38, %v42
    %v44 = vmul.f32 %v43, 1.442695
    %v45 = vpow.pop %v44
    %v46 = vsel %vm39, %v45, 0.0
    %47 = vadd.xlane.f32.xlu0 %v46
    %v48 = vpop.xlane.xlu0 %47
    %v49 = vrcp.pop %v48
    %v50 = vmul.f32 %v45, %v49
    %v51 = vld [vmem:[#allocation5] sm:$0xff]
    %v52 = vld [vmem:[#allocation5 + $0x8] sm:$0xff]
    %v53 = vld [vmem:[#allocation5 + $0x10] sm:$0xff]
    %v54 = vld [vmem:[#allocation5 + $0x18] sm:$0xff]
    %v55 = vld [vmem:[#allocation5 + $0x20] sm:$0xff]
    %v56 = vld [vmem:[#allocation5 + $0x28] sm:$0xff]
    %v57 = vld [vmem:[#allocation5 + $0x30] sm:$0xff]
    %v58 = vld [vmem:[#allocation5 + $0x38] sm:$0xff]
    %v59 = vlaneseq
    %v60 = vshrl.u32 %v59, 7
    %v61 = vsub.s32 0, %v60
    %v62 = vrot.slane %v50, %v61
    %64 = vbcast.lane.b32.xlu0 %v62, 256
    %v65 = vpop.permute.xlu0 %64
    %v66 = vlaneseq
    %v67 = vshrl.u32 %v66, 7
    %v68 = vsub.s32 1, %v67
    %v69 = vrot.slane %v50, %v68
    %71 = vbcast.lane.b32.xlu0 %v69, 256
    %v72 = vpop.permute.xlu0 %71
    %v73 = vlaneseq
    %v74 = vshrl.u32 %v73, 7
    %v75 = vsub.s32 2, %v74
    %v76 = vrot.slane %v50, %v75
    %78 = vbcast.lane.b32.xlu0 %v76, 256
    %v79 = vpop.permute.xlu0 %78
    %v80 = vlaneseq
    %v81 = vshrl.u32 %v80, 7
    %v82 = vsub.s32 3, %v81
    %v83 = vrot.slane %v50, %v82
    %85 = vbcast.lane.b32.xlu0 %v83, 256
    %v86 = vpop.permute.xlu0 %85
    %v87 = vlaneseq
    %v88 = vshrl.u32 %v87, 7
    %v89 = vsub.s32 4, %v88
    %v90 = vrot.slane %v50, %v89
    %92 = vbcast.lane.b32.xlu0 %v90, 256
    %v93 = vpop.permute.xlu0 %92
    %v94 = vlaneseq
    %v95 = vshrl.u32 %v94, 7
    %v96 = vsub.s32 5, %v95
    %v97 = vrot.slane %v50, %v96
    %99 = vbcast.lane.b32.xlu0 %v97, 256
    %v100 = vpop.permute.xlu0 %99
    %v101 = vlaneseq
    %v102 = vshrl.u32 %v101, 7
    %v103 = vsub.s32 6, %v102
    %v104 = vrot.slane %v50, %v103
    %106 = vbcast.lane.b32.xlu0 %v104, 256
    %v107 = vpop.permute.xlu0 %106
    %v108 = vlaneseq
    %v109 = vshrl.u32 %v108, 7
    %v110 = vsub.s32 7, %v109
    %v111 = vrot.slane %v50, %v110
    %113 = vbcast.lane.b32.xlu0 %v111, 256
    %v114 = vpop.permute.xlu0 %113
    %v115 = vmul.f32 %v65, %v51
    %v116 = vmul.f32 %v72, %v52
    %v117 = vmul.f32 %v79, %v53
    %v118 = vmul.f32 %v86, %v54
    %v119 = vmul.f32 %v93, %v55
    %v120 = vmul.f32 %v100, %v56
    %v121 = vmul.f32 %v107, %v57
    %v122 = vmul.f32 %v114, %v58
    %vm123 = vcmask 130048
    %v124 = vsel %vm123, %v115, 0.0
    %v125 = vrot.slane %v124, 4
    %v126 = vadd.f32 %v124, %v125
    %v127 = vrot.slane %v126, 2
    %v128 = vadd.f32 %v126, %v127
    %v129 = vrot.slane %v128, 1
    %v130 = vadd.f32 %v128, %v129
    %v131 = vsel %vm123, %v116, 0.0
    %v132 = vrot.slane %v131, 4
    %v133 = vadd.f32 %v131, %v132
    %v134 = vrot.slane %v133, 2
    %v135 = vadd.f32 %v133, %v134
    %v136 = vrot.slane %v135, 1
    %v137 = vadd.f32 %v135, %v136
    %v138 = vsel %vm123, %v117, 0.0
    %v139 = vrot.slane %v138, 4
    %v140 = vadd.f32 %v138, %v139
    %v141 = vrot.slane %v140, 2
    %v142 = vadd.f32 %v140, %v141
    %v143 = vrot.slane %v142, 1
    %v144 = vadd.f32 %v142, %v143
    %v145 = vsel %vm123, %v118, 0.0
    %v146 = vrot.slane %v145, 4
    %v147 = vadd.f32 %v145, %v146
    %v148 = vrot.slane %v147, 2
    %v149 = vadd.f32 %v147, %v148
    %v150 = vrot.slane %v149, 1
    %v151 = vadd.f32 %v149, %v150
    %v152 = vsel %vm123, %v119, 0.0
    %v153 = vrot.slane %v152, 4
    %v154 = vadd.f32 %v152, %v153
    %v155 = vrot.slane %v154, 2
    %v156 = vadd.f32 %v154, %v155
    %v157 = vrot.slane %v156, 1
    %v158 = vadd.f32 %v156, %v157
    %v159 = vsel %vm123, %v120, 0.0
    %v160 = vrot.slane %v159, 4
    %v161 = vadd.f32 %v159, %v160
    %v162 = vrot.slane %v161, 2
    %v163 = vadd.f32 %v161, %v162
    %v164 = vrot.slane %v163, 1
    %v165 = vadd.f32 %v163, %v164
    %v166 = vsel %vm123, %v121, 0.0
    %v167 = vrot.slane %v166, 4
    %v168 = vadd.f32 %v166, %v167
    %v169 = vrot.slane %v168, 2
    %v170 = vadd.f32 %v168, %v169
    %v171 = vrot.slane %v170, 1
    %v172 = vadd.f32 %v170, %v171
    %v173 = vsel %vm123, %v122, 0.0
    %v174 = vrot.slane %v173, 4
    %v175 = vadd.f32 %v173, %v174
    %v176 = vrot.slane %v175, 2
    %v177 = vadd.f32 %v175, %v176
    %v178 = vrot.slane %v177, 1
    %v179 = vadd.f32 %v177, %v178
    %vm188 = vcmask 1041409
    %v189 = vsel %vm188, %v137, %v130
    %vm190 = vcmask 1042434
    %v191 = vsel %vm190, %v144, %v189
    %vm192 = vcmask 1043459
    %v193 = vsel %vm192, %v151, %v191
    %vm194 = vcmask 1044484
    %v195 = vsel %vm194, %v158, %v193
    %vm196 = vcmask 1045509
    %v197 = vsel %vm196, %v165, %v195
    %vm198 = vcmask 1046534
    %v199 = vsel %vm198, %v172, %v197
    %vm200 = vcmask 1047559
    %v201 = vsel %vm200, %v179, %v199
    %203 = vst.msk [vmem:[#allocation7] sm:$0xff] %vm123, %v201
    // Predicated region
    $region18: #{tpu_custom_call.1} parent=1 // pred_check
      _
    $region19: #{tpu_custom_call.1} parent=1 // pred_check_branch
      %205 = sbr.rel (0) target = $region21
    $region20: #{tpu_custom_call.1} parent=1 // pred_region
      %s207 = ssub.s32 128, 128
      %208 = vsyncadd [#allocation4], %s207
      %s210 = sshll.u32 [#allocation7], 4
      %s211 = int_to_ptr.vmem [resolvable:$true] %s210
      %213 = dma.vmem_to_hbm [thread:$0]  %s211, 128, %s2, [#allocation4]
    $region21: #{tpu_custom_call.1} parent=1 // pred_fallthru
      _
    // Predicated region
    $region22: #{tpu_custom_call.1} parent=1 // pred_check
      _
    $region23: #{tpu_custom_call.1} parent=1 // pred_check_branch
      %215 = sbr.rel (0) target = $region25
    $region24: #{tpu_custom_call.1} parent=1 // pred_region
      %216 = dma.done [#allocation4], 128
    $region25: #{tpu_custom_call.1} parent=1 // pred_fallthru
      _
    %217 = vsyncpa [#allocation3], 1
    %218 = vsyncpa [#allocation6], 1
    %219 = vsyncpa [#allocation4], 1

</llo_original>
